<compile_context>
chip_gen: v6e
topology: v6e:2x2x1
jax: 0.10.0
libtpu: 0.0.40
codegen_flags: <defaults>
</compile_context>

<pallas_src>
import functools

import jax
import jax.numpy as jnp
from jax.experimental import pallas as pl
from jax.experimental.pallas import tpu as pltpu


def _round_up(v, m):
    return ((v + m - 1) // m) * m


# ----------------------------------------------------------------------------
# Kernel 1: fused affine apply (forward / reverse), lane-dense (rows, H*W) view
# ----------------------------------------------------------------------------
def _actnorm_apply_kernel(ls_ref, sh_ref, x_ref, o_ref, *, reverse):
    ls = ls_ref[...]          # (TR, 1)  per-row log_scale (row = (n, c) pair)
    sh = sh_ref[...]          # (TR, 1)  per-row shift
    x = x_ref[...]            # (TR, Lp) activations, lanes = spatial positions
    if reverse:
        o_ref[...] = (x - sh) * jnp.exp(-ls)
    else:
        o_ref[...] = x * jnp.exp(ls) + sh


def _actnorm_apply(x_nchw, log_scale, shift, reverse):
    N, C, H, W = x_nchw.shape
    rows, L = N * C, H * W
    x2 = x_nchw.reshape(rows, L).astype(jnp.float32)

    # per-row (n, c) parameter columns
    ls_row = jnp.tile(log_scale.reshape(1, C), (N, 1)).reshape(rows, 1).astype(jnp.float32)
    sh_row = jnp.tile(shift.reshape(1, C), (N, 1)).reshape(rows, 1).astype(jnp.float32)

    # pad once at the boundary: rows -> multiple of the row tile, lanes -> multiple of 128
    TR = min(_round_up(rows, 8), 256)
    rows_p = _round_up(rows, TR)
    L_p = _round_up(L, 128)
    if rows_p != rows or L_p != L:
        x2 = jnp.pad(x2, ((0, rows_p - rows), (0, L_p - L)))
        ls_row = jnp.pad(ls_row, ((0, rows_p - rows), (0, 0)))
        sh_row = jnp.pad(sh_row, ((0, rows_p - rows), (0, 0)))

    out = pl.pallas_call(
        functools.partial(_actnorm_apply_kernel, reverse=reverse),
        out_shape=jax.ShapeDtypeStruct((rows_p, L_p), jnp.float32),
        grid=(rows_p // TR,),
        in_specs=[
            pl.BlockSpec((TR, 1), lambda r: (r, 0)),
            pl.BlockSpec((TR, 1), lambda r: (r, 0)),
            pl.BlockSpec((TR, L_p), lambda r: (r, 0)),
        ],
        out_specs=pl.BlockSpec((TR, L_p), lambda r: (r, 0)),
        compiler_params=pltpu.CompilerParams(dimension_semantics=("parallel",)),
    )(ls_row, sh_row, x2)

    return out[:rows, :L].reshape(N, C, H, W)


# ----------------------------------------------------------------------------
# Kernel 2: data-dependent init statistics (shift = -mean, log_scale = -log(std))
# ----------------------------------------------------------------------------
def _actnorm_init_kernel(x_ref, ls_ref, sh_ref, *, n_samples):
    x = x_ref[...]                                           # (C, NSp), padded cols are 0
    inv_n = 1.0 / n_samples
    mean = jnp.sum(x, axis=-1, keepdims=True) * inv_n        # (C, 1)
    d = x - mean
    # zero out padded columns so they do not contribute to the variance
    col = jax.lax.broadcasted_iota(jnp.int32, x.shape, 1)
    d = jnp.where(col < n_samples, d, 0.0)
    var = jnp.sum(d * d, axis=-1, keepdims=True) / (n_samples - 1)   # unbiased (torch.std)
    ls_ref[...] = -0.5 * jnp.log(var)                        # -log(sqrt(var)) = -log(std)
    sh_ref[...] = -mean


def actnorm_init(x_nchw):
    """Returns (log_scale, shift), each of shape (1, C, 1, 1), matching the
    data-dependent first-forward initialization of the PyTorch module."""
    N, C, H, W = x_nchw.shape
    NS = N * H * W
    xc = jnp.transpose(x_nchw, (1, 0, 2, 3)).reshape(C, NS).astype(jnp.float32)
    NSp = _round_up(NS, 128)
    if NSp != NS:
        xc = jnp.pad(xc, ((0, 0), (0, NSp - NS)))

    ls, sh = pl.pallas_call(
        functools.partial(_actnorm_init_kernel, n_samples=NS),
        out_shape=(jax.ShapeDtypeStruct((C, 1), jnp.float32),
                   jax.ShapeDtypeStruct((C, 1), jnp.float32)),
        grid=(1,),
        in_specs=[pl.BlockSpec((C, NSp), lambda i: (0, 0))],
        out_specs=(pl.BlockSpec((C, 1), lambda i: (0, 0)),
                   pl.BlockSpec((C, 1), lambda i: (0, 0))),
        compiler_params=pltpu.CompilerParams(dimension_semantics=("arbitrary",)),
    )(xc)
    return ls.reshape(1, C, 1, 1), sh.reshape(1, C, 1, 1)


# ----------------------------------------------------------------------------
# Functional ActNorm forward (mirrors the PyTorch module's return signature)
# ----------------------------------------------------------------------------
def actnorm_forward(x, log_scale, shift, reverse=False):
    out = _actnorm_apply(x, log_scale, shift, reverse)
    return out, log_scale


# ----------------------------------------------------------------------------
if __name__ == "__main__":
    key = jax.random.PRNGKey(0)
    N, C, H, W = 2, 4, 16, 16
    x = jax.random.normal(key, (N, C, H, W), jnp.float32) * 1.7 + 0.3

    # --- data-dependent init (Pallas reduction kernel) ---
    log_scale, shift = jax.jit(actnorm_init)(x)
    jax.block_until_ready((log_scale, shift))

    # reference init (plain JAX)
    shift_ref = -jnp.mean(x, axis=(0, 2, 3), keepdims=True)
    std_ref = jnp.std(jnp.transpose(x, (1, 0, 2, 3)).reshape(C, -1), axis=1, ddof=1)
    log_scale_ref = -jnp.log(std_ref).reshape(1, C, 1, 1)

    # --- forward apply (Pallas elementwise kernel) ---
    fwd = jax.jit(functools.partial(actnorm_forward, reverse=False))
    y, ls_out = fwd(x, log_scale, shift)
    jax.block_until_ready((y, ls_out))
    y_ref = x * jnp.exp(log_scale_ref) + shift_ref

    # --- reverse apply: must invert the forward ---
    rev = jax.jit(functools.partial(actnorm_forward, reverse=True))
    x_rt, _ = rev(y, log_scale, shift)
    jax.block_until_ready(x_rt)

    err_init = max(float(jnp.max(jnp.abs(log_scale - log_scale_ref))),
                   float(jnp.max(jnp.abs(shift - shift_ref))))
    err_fwd = float(jnp.max(jnp.abs(y - y_ref)))
    err_rt = float(jnp.max(jnp.abs(x_rt - x)))
    assert err_init < 1e-4, ("init mismatch", err_init)
    assert err_fwd < 1e-4, ("forward mismatch", err_fwd)
    assert err_rt < 1e-4, ("reverse roundtrip mismatch", err_rt)
    print("KERNEL_OK")
</pallas_src>

<mosaic_0001>
module attributes {stable_mosaic.version = 11 : i64} {
  func.func @_actnorm_init_kernel(%arg0: i32, %arg1: memref<4x512xf32, #tpu.memory_space<vmem>>, %arg2: memref<4x1xf32, #tpu.memory_space<vmem>>, %arg3: memref<4x1xf32, #tpu.memory_space<vmem>>) attributes {dimension_semantics = [#tpu.dimension_semantics<arbitrary>], iteration_bounds = array<i64: 1>, scalar_prefetch = 0 : i64, scratch_operands = 0 : i64, tpu.core_type = #tpu.core_type<tc>, window_params = [{pipeline_mode = #tpu.pipeline_mode<synchronous>, transform_indices = @transform_0, window_bounds = array<i64: 4, 512>}, {pipeline_mode = #tpu.pipeline_mode<synchronous>, transform_indices = @transform_1, window_bounds = array<i64: 4, 1>}, {pipeline_mode = #tpu.pipeline_mode<synchronous>, transform_indices = @transform_2, window_bounds = array<i64: 4, 1>}]} {
    %c0 = arith.constant 0 : index
    %c0_0 = arith.constant 0 : index
    %0 = vector.load %arg1[%c0, %c0_0] : memref<4x512xf32, #tpu.memory_space<vmem>>, vector<4x512xf32>
    %cst = arith.constant dense<0.000000e+00> : vector<4xf32>
    %1 = vector.multi_reduction <add>, %0, %cst [1] : vector<4x512xf32> to vector<4xf32>
    %2 = vector.shape_cast %1 : vector<4xf32> to vector<4x1xf32>
    %cst_1 = arith.constant 0.001953125 : f32
    %3 = vector.broadcast %cst_1 : f32 to vector<4x1xf32>
    %4 = arith.mulf %2, %3 : vector<4x1xf32>
    %5 = vector.broadcast %4 : vector<4x1xf32> to vector<4x512xf32>
    %6 = arith.subf %0, %5 : vector<4x512xf32>
    %7 = tpu.iota {dimensions = array<i32: 1>} : vector<4x512xi32>
    %c512_i32 = arith.constant 512 : i32
    %8 = vector.broadcast %c512_i32 : i32 to vector<4x512xi32>
    %9 = arith.cmpi slt, %7, %8 : vector<4x512xi32>
    %cst_2 = arith.constant 0.000000e+00 : f32
    %10 = vector.broadcast %cst_2 : f32 to vector<4x512xf32>
    %11 = arith.select %9, %6, %10 : vector<4x512xi1>, vector<4x512xf32>
    %12 = arith.mulf %11, %11 : vector<4x512xf32>
    %cst_3 = arith.constant dense<0.000000e+00> : vector<4xf32>
    %13 = vector.multi_reduction <add>, %12, %cst_3 [1] : vector<4x512xf32> to vector<4xf32>
    %14 = vector.shape_cast %13 : vector<4xf32> to vector<4x1xf32>
    %cst_4 = arith.constant 5.110000e+02 : f32
    %15 = vector.broadcast %cst_4 : f32 to vector<4x1xf32>
    %16 = arith.divf %14, %15 : vector<4x1xf32>
    %17 = math.log %16 : vector<4x1xf32>
    %cst_5 = arith.constant -5.000000e-01 : f32
    %18 = vector.broadcast %cst_5 : f32 to vector<4x1xf32>
    %19 = arith.mulf %18, %17 : vector<4x1xf32>
    %c0_6 = arith.constant 0 : index
    %c0_7 = arith.constant 0 : index
    %20 = vector.load %arg2[%c0_6, %c0_7] : memref<4x1xf32, #tpu.memory_space<vmem>>, vector<4x1xf32>
    tpu.vector_store %arg2[%c0_6, %c0_7], %19 {strides = array<i32>} : memref<4x1xf32, #tpu.memory_space<vmem>>, vector<4x1xf32>,
    %cst_8 = arith.constant 0.000000e+00 : f32
    %21 = vector.broadcast %cst_8 : f32 to vector<4x1xf32>
    %22 = arith.subf %21, %4 : vector<4x1xf32>
    %c0_9 = arith.constant 0 : index
    %c0_10 = arith.constant 0 : index
    %23 = vector.load %arg3[%c0_9, %c0_10] : memref<4x1xf32, #tpu.memory_space<vmem>>, vector<4x1xf32>
    tpu.vector_store %arg3[%c0_9, %c0_10], %22 {strides = array<i32>} : memref<4x1xf32, #tpu.memory_space<vmem>>, vector<4x1xf32>,
    return
  }
  func.func @transform_0(%arg0: i32) -> (i32, i32) {
    %c0_i32 = arith.constant 0 : i32
    %c0_i32_0 = arith.constant 0 : i32
    %c0_i32_1 = arith.constant 0 : i32
    return %c0_i32, %c0_i32_0 : i32, i32
  }
  func.func @transform_1(%arg0: i32) -> (i32, i32) {
    %c0_i32 = arith.constant 0 : i32
    %c0_i32_0 = arith.constant 0 : i32
    %c0_i32_1 = arith.constant 0 : i32
    return %c0_i32, %c0_i32_0 : i32, i32
  }
  func.func @transform_2(%arg0: i32) -> (i32, i32) {
    %c0_i32 = arith.constant 0 : i32
    %c0_i32_0 = arith.constant 0 : i32
    %c0_i32_1 = arith.constant 0 : i32
    return %c0_i32, %c0_i32_0 : i32, i32
  }
}

</mosaic_0001>

<llo_original>
// kernel: actnorm_init.1
$region0: #{actnorm_init.1}
  #allocation0 [shape = 'u32[]', space=smem, size = 0x4, offset = 0x4, fixed_abs, tag = 'smem constant byte address 0x4 - core index']
  #allocation1 [shape = 'u32[144,128]{1,0:T(1,128)}', space=vmem, size = 0x12000, scoped, tag = 'internal scratch']
  %s0 = inlined_call_operand.vmem [shape: f32[4,512], index: 0, kind: input, shape index: {}]
  %s1 = inlined_call_operand.vmem [shape: f32[4,1], index: 1, kind: output, shape index: {0}]
  %s2 = inlined_call_operand.vmem [shape: f32[4,1], index: 2, kind: output, shape index: {1}]
  %3 = xla_tuple %s1, %s2
  %s4 = sld [smem:[#allocation0]]
  $region22: #{actnorm_init.1} parent=0
    _
  %s6 = ssub.s32 1, %s4
  %s7 = scalar_select 0, %s6, %s4
  // Predicated region
  $region2: #{actnorm_init.1} parent=0 // pred_check
    _
  $region3: #{actnorm_init.1} parent=0 // pred_check_branch
    %9 = sbr.rel (0) target = $region5
  $region4: #{actnorm_init.1} parent=0 // pred_region
    _
  $region5: #{actnorm_init.1} parent=0 // pred_fallthru
    _
  %v10 = vld [vmem:[%s0] sm:$0xff]
  %v11 = vld [vmem:[%s0 + $0x8] sm:$0xff]
  %v14 = vcombine.high %v10, %v10
  %v15 = vcombine.high %v11, %v11
  %vm18 = vcmask 1043456
  %v19 = vsel %vm18, %v10, 0.0
  %v20 = vsel %vm18, %v14, 0.0
  %v21 = vadd.f32 %v19, %v20
  %v22 = vsel %vm18, %v11, 0.0
  %v23 = vadd.f32 %v21, %v22
  %v24 = vsel %vm18, %v15, 0.0
  %v25 = vadd.f32 %v23, %v24
  %26 = vadd.xlane.f32.xlu0 %v25
  %v27 = vpop.xlane.xlu0 %26
  %v28 = vmul.f32 %v27, 0.001953125
  %v31 = vunpack.c.l.s4 839922192
  %v32 = vunpack.c.0.s8 %v31
  %v33 = vlaneseq
  %v34 = vshrl.u32 %v33, 7
  %v35 = vsub.s32 %v32, %v34
  %v36 = vrot.slane %v28, %v35
  %v38 = vsub.f32 %v10, %v36
  %v39 = vsub.f32 %v11, %v36
  %v40 = vlaneseq
  %v41 = vand.u32 %v40, 127
  %v42 = vadd.s32 %v41, 128
  %v43 = vadd.s32 %v41, 256
  %v44 = vadd.s32 %v41, 384
  %vm45 = vcmp.lt.s32.totalorder %v41, 512
  %vm46 = vcmp.lt.s32.totalorder %v42, 512
  %vm47 = vcmp.lt.s32.totalorder %v43, 512
  %vm48 = vcmp.lt.s32.totalorder %v44, 512
  %v51 = vcombine.high %v38, %v38
  %v52 = vcombine.high %v39, %v39
  %v55 = vsel %vm45, %v38, 0.0
  %v56 = vsel %vm46, %v51, 0.0
  %v57 = vsel %vm47, %v39, 0.0
  %v58 = vsel %vm48, %v52, 0.0
  %v59 = vmul.f32 %v55, %v55
  %v60 = vmul.f32 %v56, %v56
  %v61 = vmul.f32 %v57, %v57
  %v62 = vmul.f32 %v58, %v58
  %v63 = vsel %vm18, %v59, 0.0
  %v64 = vsel %vm18, %v60, 0.0
  %v65 = vadd.f32 %v63, %v64
  %v66 = vsel %vm18, %v61, 0.0
  %v67 = vadd.f32 %v65, %v66
  %v68 = vsel %vm18, %v62, 0.0
  %v69 = vadd.f32 %v67, %v68
  %70 = vadd.xlane.f32.xlu0 %v69
  %v71 = vpop.xlane.xlu0 %70
  %v72 = vrcp.pop 511.0
  %v73 = vmul.f32 %v71, %v72
  %v74 = vlog2.pop %v73
  %v75 = vmul.f32 %v74, 0.6931472
  %v76 = vmul.f32 %v75, -0.5
  %vm77 = vcmask 3072
  %78 = vst.msk [vmem:[%s1] sm:$0xf] %vm77, %v76
  %v79 = vsub.f32 0.0, %v28
  %80 = vst.msk [vmem:[%s2] sm:$0xf] %vm77, %v79
  // Predicated region
  $region6: #{actnorm_init.1} parent=0 // pred_check
    _
  $region7: #{actnorm_init.1} parent=0 // pred_check_branch
    %82 = sbr.rel (0) target = $region9
  $region8: #{actnorm_init.1} parent=0 // pred_region
    _
  $region9: #{actnorm_init.1} parent=0 // pred_fallthru
    _
  // Predicated region
  $region10: #{actnorm_init.1} parent=0 // pred_check
    _
  $region11: #{actnorm_init.1} parent=0 // pred_check_branch
    %84 = sbr.rel (0) target = $region13
  $region12: #{actnorm_init.1} parent=0 // pred_region
    _
  $region13: #{actnorm_init.1} parent=0 // pred_fallthru
    _
  // Predicated region
  $region14: #{actnorm_init.1} parent=0 // pred_check
    _
  $region15: #{actnorm_init.1} parent=0 // pred_check_branch
    %86 = sbr.rel (0) target = $region17
  $region16: #{actnorm_init.1} parent=0 // pred_region
    _
  $region17: #{actnorm_init.1} parent=0 // pred_fallthru
    _
  // Predicated region
  $region18: #{actnorm_init.1} parent=0 // pred_check
    _
  $region19: #{actnorm_init.1} parent=0 // pred_check_branch
    %88 = sbr.rel (0) target = $region21
  $region20: #{actnorm_init.1} parent=0 // pred_region
    _
  $region21: #{actnorm_init.1} parent=0 // pred_fallthru
    _

</llo_original>
